<compile_context>
chip_gen: v7x
topology: tpu7x:2x2x1
jax: 0.10.0
libtpu: 0.0.40
codegen_flags: <defaults>
</compile_context>

<pallas_src>
import functools

import jax
import jax.numpy as jnp
from jax.experimental import pallas as pl
from jax.experimental.pallas import tpu as pltpu


def _tfidf_linear_tanh_kernel(tf_ref, idf_ref, w_ref, b_ref, o_ref,
                              acc_ref, nrm_ref, *, feat, tk):
    # tf_ref:  [tm, tk] raw term counts (any dtype; bf16 in the demo)
    # idf_ref: [1, tk]  f32  idf weights (for the row-norm accumulation)
    # w_ref:   [tk, O]  bf16 idf-folded, transposed Linear weight tile
    # b_ref:   [1, O]   f32  bias (resident)
    # o_ref:   [tm, O]  output tile (written on the last k step only)
    # acc_ref: [tm, O]  f32 VMEM matmul accumulator
    # nrm_ref: [tm, 1]  f32 VMEM ||tf*idf||^2 accumulator
    k = pl.program_id(1)
    nk = pl.num_programs(1)

    @pl.when(k == 0)
    def _():
        acc_ref[...] = jnp.zeros_like(acc_ref)
        nrm_ref[...] = jnp.zeros_like(nrm_ref)

    tf = tf_ref[...]
    if feat % tk != 0:  # static: mask the ragged last vocabulary tile only
        col = jax.lax.broadcasted_iota(jnp.int32, tf.shape, 1)
        valid = (k * tk + col) < feat
        tf = jnp.where(valid, tf, jnp.zeros_like(tf))

    # MXU: raw counts (exact small integers in bf16) x idf-folded bf16 weight.
    tf_bf = tf if tf.dtype == jnp.bfloat16 else tf.astype(jnp.bfloat16)
    acc_ref[...] += jnp.dot(tf_bf, w_ref[...], preferred_element_type=jnp.float32)

    # Row-norm accumulation in f32 (only surviving per-element VPU work).
    x = tf.astype(jnp.float32) * idf_ref[...]
    nrm_ref[...] += jnp.sum(x * x, axis=-1, keepdims=True)

    @pl.when(k == nk - 1)
    def _():
        inv_norm = jax.lax.rsqrt(jnp.maximum(nrm_ref[...], 1e-24))
        o_ref[...] = jnp.tanh(acc_ref[...] * inv_norm + b_ref[...]).astype(o_ref.dtype)


def _round_up(x, m):
    return (x + m - 1) // m * m


@functools.lru_cache(maxsize=1)
def _vmem_plan():
    """(tile budget bytes, vmem_limit_bytes) sized from the device's VMEM."""
    try:
        cap = int(pltpu.get_tpu_info().vmem_capacity_bytes)
    except Exception:
        cap = 64 * 1024 * 1024  # conservative (v7x-sized) fallback
    limit = min(cap * 3 // 4, 96 * 1024 * 1024)   # 48 MiB on v7x, 96 MiB on v5e/v6e
    return limit * 4 // 5, limit


@functools.lru_cache(maxsize=1)
def _num_tensorcores():
    """2 on v7x-style megacore parts, 1 on v5e/v6e."""
    try:
        kind = jax.devices()[0].device_kind.lower()
    except Exception:
        return 1
    return 2 if "7" in kind else 1


def _choose_tiles(B, F, O, cnt_bytes, out_bytes, budget, num_cores):
    b16 = _round_up(B, 16)
    tm = min(512, b16)                       # bf16 packs 2 rows/sublane -> x16
    if num_cores >= 2 and b16 >= 32:
        # Only split rows on 2-TensorCore parts; keep step counts even.
        tm = min(tm, _round_up(pl.cdiv(b16, 2), 16))

    f128 = _round_up(F, 128)

    def fits(tm_, tk_):
        need = (2 * tm_ * tk_ * cnt_bytes    # streamed counts (double-buffered)
                + 2 * tk_ * O * 2            # streamed idf-folded weight (bf16)
                + 2 * tk_ * 4                # streamed idf (f32)
                + 2 * tm_ * O * out_bytes    # output tile
                + tm_ * O * 4                # f32 accumulator scratch
                + tm_ * 128 * 4              # norm scratch (lane-padded)
                + O * 4)                     # resident bias
        return need <= budget

    tk = f128                                # whole vocabulary per step if it fits
    if not fits(tm, tk):
        tk = max(256, (min(f128, 4096) // 256) * 256)   # MXU contraction multiples
        while tk > 256 and not fits(tm, tk):
            tk -= 256
    while tm > 16 and not fits(tm, tk):
        tm -= 16
    return tm, tk


@functools.partial(jax.jit, static_argnames=("tm", "tk", "out_dtype"))
def tfidfnet_emb_forward(tf_counts, idf, w_t, b, *, tm=None, tk=None,
                         out_dtype=jnp.float32):
    """Fused tf-idf (idf scale + L2 norm) + Linear + Tanh via one Pallas kernel.

    tf_counts: [B, F] raw term counts (bf16 exact for counts <= 256, or f32/int).
    idf:       [F]    idf weights.
    w_t:       [F, O] transposed nn.Linear weight.
    b:         [O]    bias.
    """
    B, F = tf_counts.shape
    O = w_t.shape[1]

    budget, vmem_limit = _vmem_plan()
    cores = _num_tensorcores()
    tm_auto, tk_auto = _choose_tiles(
        B, F, O, jnp.dtype(tf_counts.dtype).itemsize, jnp.dtype(out_dtype).itemsize,
        budget, cores)
    tm = tm_auto if tm is None else tm
    tk = tk_auto if tk is None else tk

    nk = pl.cdiv(F, tk)
    F_pad = nk * tk

    # Fold idf into the Linear weight once (f32 product, bf16 for the MXU).
    # Weight / idf are padded along F so their k-blocks never read out of
    # bounds; the counts' ragged last k-block is masked inside the kernel,
    # and the ragged last row-block is handled by Pallas edge masking.
    w_folded = (idf.astype(jnp.float32)[:, None]
                * w_t.astype(jnp.float32)).astype(jnp.bfloat16)
    idf2 = idf.astype(jnp.float32).reshape(1, F)
    if F_pad != F:
        w_folded = jnp.pad(w_folded, ((0, F_pad - F), (0, 0)))
        idf2 = jnp.pad(idf2, ((0, 0), (0, F_pad - F)))
    b2 = b.astype(jnp.float32).reshape(1, O)

    kernel = functools.partial(_tfidf_linear_tanh_kernel, feat=F, tk=tk)
    return pl.pallas_call(
        kernel,
        out_shape=jax.ShapeDtypeStruct((B, O), out_dtype),
        grid=(pl.cdiv(B, tm), nk),
        in_specs=[
            pl.BlockSpec((tm, tk), lambda i, k: (i, k)),   # streamed count tile
            pl.BlockSpec((1, tk), lambda i, k: (0, k)),    # idf tile (norm path)
            pl.BlockSpec((tk, O), lambda i, k: (k, 0)),    # idf-folded weight tile
            pl.BlockSpec((1, O), lambda i, k: (0, 0)),     # bias, resident
        ],
        out_specs=pl.BlockSpec((tm, O), lambda i, k: (i, 0)),
        scratch_shapes=[pltpu.VMEM((tm, O), jnp.float32),
                        pltpu.VMEM((tm, 1), jnp.float32)],
        compiler_params=pltpu.CompilerParams(
            dimension_semantics=("parallel", "arbitrary"),
            vmem_limit_bytes=int(vmem_limit),
        ),
    )(tf_counts, idf2, w_folded, b2)


if __name__ == "__main__":
    key = jax.random.PRNGKey(0)
    k_cnt, k_mask, k_idf, k_w, k_b = jax.random.split(key, 5)

    batch = 20           # not a tile multiple: exercises ragged-row handling
    in_features = 256    # vocabulary size of the (synthetic) vectorizer
    out_features = 128   # nn.Linear(in_features, out_features=128)

    # TODO(synk): real text tokenization / vocabulary lookup (vectorizer.transform)
    # has no Pallas equivalent; term counts are synthesized deterministically.
    counts = jax.random.randint(k_cnt, (batch, in_features), 0, 5)
    mask = jax.random.uniform(k_mask, (batch, in_features)) < 0.25
    tf_counts = (counts * mask).astype(jnp.bfloat16)    # sparse-ish counts, exact in bf16
    idf = 1.0 + jax.random.uniform(k_idf, (in_features,), minval=0.0, maxval=3.0)

    # Deterministic Linear params, PyTorch-style uniform(-1/sqrt(in), 1/sqrt(in)).
    bound = 1.0 / (in_features ** 0.5)
    w = jax.random.uniform(k_w, (out_features, in_features),
                           minval=-bound, maxval=bound, dtype=jnp.float32)
    b = jax.random.uniform(k_b, (out_features,),
                           minval=-bound, maxval=bound, dtype=jnp.float32)
    w_t = w.T  # [F, O] layout for the kernel

    out = tfidfnet_emb_forward(tf_counts, idf, w_t, b)
    out = jax.block_until_ready(out)

    # Reference: full-f32 tf-idf (idf scale + L2 norm) -> Linear -> Tanh,
    # i.e. exactly what TfidfVectorizer + nn.Linear + nn.Tanh compute.
    x_f32 = tf_counts.astype(jnp.float32) * idf[None, :]
    norm = jnp.sqrt(jnp.sum(x_f32 * x_f32, axis=-1, keepdims=True))
    tfidf_ref = x_f32 / jnp.maximum(norm, 1e-12)
    ref = jnp.tanh(tfidf_ref @ w_t + b[None, :])

    assert out.shape == (batch, out_features)
    # bf16 MXU operands (f32 accumulate, exact integer counts) -> tight enough.
    assert jnp.allclose(out, ref, atol=1e-2, rtol=1e-2)

    print("KERNEL_OK")
</pallas_src>

<mosaic_0001>
module attributes {stable_mosaic.version = 11 : i64} {
  func.func @_tfidf_linear_tanh_kernel(%arg0: i32, %arg1: i32, %arg2: memref<32x256xbf16, #tpu.memory_space<vmem>>, %arg3: memref<1x256xf32, #tpu.memory_space<vmem>>, %arg4: memref<256x128xbf16, #tpu.memory_space<vmem>>, %arg5: memref<1x128xf32, #tpu.memory_space<vmem>>, %arg6: memref<32x128xf32, #tpu.memory_space<vmem>>, %arg7: memref<32x128xf32, #tpu.memory_space<vmem>>, %arg8: memref<32x1xf32, #tpu.memory_space<vmem>>) attributes {dimension_semantics = [#tpu.dimension_semantics<parallel>, #tpu.dimension_semantics<arbitrary>], iteration_bounds = array<i64: 1, 1>, scalar_prefetch = 0 : i64, scratch_operands = 2 : i64, tpu.core_type = #tpu.core_type<tc>, window_params = [{transform_indices = @transform_0, window_bounds = array<i64: 32, 256>}, {transform_indices = @transform_1, window_bounds = array<i64: 1, 256>}, {transform_indices = @transform_2, window_bounds = array<i64: 256, 128>}, {pipeline_mode = #tpu.pipeline_mode<synchronous>, transform_indices = @transform_3, window_bounds = array<i64: 1, 128>}, {transform_indices = @transform_4, window_bounds = array<i64: 32, 128>}]} {
    %c0_i32 = arith.constant 0 : i32
    %0 = arith.cmpi eq, %arg1, %c0_i32 : i32
    %1 = arith.extui %0 : i1 to i32
    %c0_i32_0 = arith.constant 0 : i32
    %2 = arith.cmpi ne, %1, %c0_i32_0 : i32
    scf.if %2 {
      %cst_17 = arith.constant 0.000000e+00 : f32
      %22 = vector.broadcast %cst_17 : f32 to vector<32x128xf32>
      %c0_18 = arith.constant 0 : index
      %c0_19 = arith.constant 0 : index
      %23 = vector.load %arg7[%c0_18, %c0_19] : memref<32x128xf32, #tpu.memory_space<vmem>>, vector<32x128xf32>
      tpu.vector_store %arg7[%c0_18, %c0_19], %22 {strides = array<i32>} : memref<32x128xf32, #tpu.memory_space<vmem>>, vector<32x128xf32>,
      %cst_20 = arith.constant 0.000000e+00 : f32
      %24 = vector.broadcast %cst_20 : f32 to vector<32x1xf32>
      %c0_21 = arith.constant 0 : index
      %c0_22 = arith.constant 0 : index
      %25 = vector.load %arg8[%c0_21, %c0_22] : memref<32x1xf32, #tpu.memory_space<vmem>>, vector<32x1xf32>
      tpu.vector_store %arg8[%c0_21, %c0_22], %24 {strides = array<i32>} : memref<32x1xf32, #tpu.memory_space<vmem>>, vector<32x1xf32>,
    } else {
    }
    %c0 = arith.constant 0 : index
    %c0_1 = arith.constant 0 : index
    %3 = vector.load %arg2[%c0, %c0_1] : memref<32x256xbf16, #tpu.memory_space<vmem>>, vector<32x256xbf16>
    %c0_2 = arith.constant 0 : index
    %c0_3 = arith.constant 0 : index
    %4 = vector.load %arg7[%c0_2, %c0_3] : memref<32x128xf32, #tpu.memory_space<vmem>>, vector<32x128xf32>
    %c0_4 = arith.constant 0 : index
    %c0_5 = arith.constant 0 : index
    %5 = vector.load %arg4[%c0_4, %c0_5] : memref<256x128xbf16, #tpu.memory_space<vmem>>, vector<256x128xbf16>
    %cst = arith.constant dense<0.000000e+00> : vector<32x128xf32>
    %6 = tpu.matmul %3, %5, %cst {dimension_numbers = #tpu.dot_dimension_numbers<[1], [0], [0], [1], [0, 0, 1, 1], [], []>} : vector<32x256xbf16>, vector<256x128xbf16>, vector<32x128xf32> -> vector<32x128xf32>
    %7 = arith.addf %4, %6 : vector<32x128xf32>
    %c0_6 = arith.constant 0 : index
    %c0_7 = arith.constant 0 : index
    %8 = vector.load %arg7[%c0_6, %c0_7] : memref<32x128xf32, #tpu.memory_space<vmem>>, vector<32x128xf32>
    tpu.vector_store %arg7[%c0_6, %c0_7], %7 {strides = array<i32>} : memref<32x128xf32, #tpu.memory_space<vmem>>, vector<32x128xf32>,
    %9 = arith.extf %3 : vector<32x256xbf16> to vector<32x256xf32>
    %c0_8 = arith.constant 0 : index
    %c0_9 = arith.constant 0 : index
    %10 = vector.load %arg3[%c0_8, %c0_9] : memref<1x256xf32, #tpu.memory_space<vmem>>, vector<1x256xf32>
    %11 = vector.broadcast %10 : vector<1x256xf32> to vector<32x256xf32>
    %12 = arith.mulf %9, %11 : vector<32x256xf32>
    %c0_10 = arith.constant 0 : index
    %c0_11 = arith.constant 0 : index
    %13 = vector.load %arg8[%c0_10, %c0_11] : memref<32x1xf32, #tpu.memory_space<vmem>>, vector<32x1xf32>
    %14 = arith.mulf %12, %12 : vector<32x256xf32>
    %cst_12 = arith.constant dense<0.000000e+00> : vector<32xf32>
    %15 = vector.multi_reduction <add>, %14, %cst_12 [1] : vector<32x256xf32> to vector<32xf32>
    %16 = vector.shape_cast %15 : vector<32xf32> to vector<32x1xf32>
    %17 = arith.addf %13, %16 : vector<32x1xf32>
    %c0_13 = arith.constant 0 : index
    %c0_14 = arith.constant 0 : index
    %18 = vector.load %arg8[%c0_13, %c0_14] : memref<32x1xf32, #tpu.memory_space<vmem>>, vector<32x1xf32>
    tpu.vector_store %arg8[%c0_13, %c0_14], %17 {strides = array<i32>} : memref<32x1xf32, #tpu.memory_space<vmem>>, vector<32x1xf32>,
    %c0_i32_15 = arith.constant 0 : i32
    %19 = arith.cmpi eq, %arg1, %c0_i32_15 : i32
    %20 = arith.extui %19 : i1 to i32
    %c0_i32_16 = arith.constant 0 : i32
    %21 = arith.cmpi ne, %20, %c0_i32_16 : i32
    scf.if %21 {
      %c0_17 = arith.constant 0 : index
      %c0_18 = arith.constant 0 : index
      %22 = vector.load %arg8[%c0_17, %c0_18] : memref<32x1xf32, #tpu.memory_space<vmem>>, vector<32x1xf32>
      %cst_19 = arith.constant 1.000000e-24 : f32
      %23 = vector.broadcast %cst_19 : f32 to vector<32x1xf32>
      %24 = arith.maximumf %22, %23 : vector<32x1xf32>
      %25 = math.rsqrt %24 : vector<32x1xf32>
      %c0_20 = arith.constant 0 : index
      %c0_21 = arith.constant 0 : index
      %26 = vector.load %arg7[%c0_20, %c0_21] : memref<32x128xf32, #tpu.memory_space<vmem>>, vector<32x128xf32>
      %27 = vector.broadcast %25 : vector<32x1xf32> to vector<32x128xf32>
      %28 = arith.mulf %26, %27 : vector<32x128xf32>
      %c0_22 = arith.constant 0 : index
      %c0_23 = arith.constant 0 : index
      %29 = vector.load %arg5[%c0_22, %c0_23] : memref<1x128xf32, #tpu.memory_space<vmem>>, vector<1x128xf32>
      %30 = vector.broadcast %29 : vector<1x128xf32> to vector<32x128xf32>
      %31 = arith.addf %28, %30 : vector<32x128xf32>
      %32 = math.tanh %31 : vector<32x128xf32>
      %c0_24 = arith.constant 0 : index
      %c0_25 = arith.constant 0 : index
      %33 = vector.load %arg6[%c0_24, %c0_25] : memref<32x128xf32, #tpu.memory_space<vmem>>, vector<32x128xf32>
      tpu.vector_store %arg6[%c0_24, %c0_25], %32 {strides = array<i32>} : memref<32x128xf32, #tpu.memory_space<vmem>>, vector<32x128xf32>,
    } else {
    }
    return
  }
  func.func @transform_0(%arg0: i32, %arg1: i32) -> (i32, i32) {
    %c0_i32 = arith.constant 0 : i32
    return %arg0, %arg1 : i32, i32
  }
  func.func @transform_1(%arg0: i32, %arg1: i32) -> (i32, i32) {
    %c0_i32 = arith.constant 0 : i32
    %c0_i32_0 = arith.constant 0 : i32
    return %c0_i32, %arg1 : i32, i32
  }
  func.func @transform_2(%arg0: i32, %arg1: i32) -> (i32, i32) {
    %c0_i32 = arith.constant 0 : i32
    %c0_i32_0 = arith.constant 0 : i32
    return %arg1, %c0_i32 : i32, i32
  }
  func.func @transform_3(%arg0: i32, %arg1: i32) -> (i32, i32) {
    %c0_i32 = arith.constant 0 : i32
    %c0_i32_0 = arith.constant 0 : i32
    %c0_i32_1 = arith.constant 0 : i32
    return %c0_i32, %c0_i32_0 : i32, i32
  }
  func.func @transform_4(%arg0: i32, %arg1: i32) -> (i32, i32) {
    %c0_i32 = arith.constant 0 : i32
    %c0_i32_0 = arith.constant 0 : i32
    return %arg0, %c0_i32 : i32, i32
  }
}

</mosaic_0001>

<llo_original>
// kernel: tfidfnet_emb_forward.1
$region0: #{tfidfnet_emb_forward.1}
  #allocation0 [shape = 'u32[]', space=smem, size = 0x4, offset = 0x4, fixed_abs, tag = 'smem constant byte address 0x4 - core index']
  #allocation1 [shape = 'u32[144,128]{1,0:T(1,128)}', space=vmem, size = 0x12000, scoped, tag = 'internal scratch']
  #allocation2 [shape = 'f32[32,128]{1,0:T(8,128)}', space=vmem, size = 0x4000, scoped, tag = 'scratch operand']
  #allocation3 [shape = 'f32[32,1]{1,0:T(8,128)}', space=vmem, size = 0x4000, scoped, tag = 'scratch operand']
  %s0 = inlined_call_operand.vmem [shape: bf16[20,256], index: 0, kind: input, shape index: {}]
  %s1 = inlined_call_operand.vmem [shape: f32[1,256], index: 1, kind: input, shape index: {}]
  %s2 = inlined_call_operand.vmem [shape: bf16[256,128], index: 2, kind: input, shape index: {}]
  %s3 = inlined_call_operand.vmem [shape: f32[1,128], index: 3, kind: input, shape index: {}]
  %s4 = inlined_call_operand.hbm [shape: f32[20,128], index: 4, kind: output, shape index: {}]
  %s5 = sld [smem:[#allocation0]]
  $region34: #{tfidfnet_emb_forward.1} parent=0
    _
  %s7 = ssub.s32 1, %s5
  %s8 = scalar_select 0, %s7, %s5
  $region1: #{tfidfnet_emb_forward.1} parent=0
    #allocation4 [shape = 'u8[16384]{0}', space=vmem, size = 0x4000, scoped, tag = 'output window, operand 0, single buffered']
    #allocation5 [shape = 's32[1]{0}', space=sflag, size = 0x4, scoped, tag = 'scoped memory for tfidfnet_emb_forward.1']
    %9 = vsyncpa [#allocation5], 0
    // Predicated region
    $region2: #{tfidfnet_emb_forward.1} parent=1 // pred_check
      _
    $region3: #{tfidfnet_emb_forward.1} parent=1 // pred_check_branch
      %11 = sbr.rel (0) target = $region5
    $region4: #{tfidfnet_emb_forward.1} parent=1 // pred_region
      _
    $region5: #{tfidfnet_emb_forward.1} parent=1 // pred_fallthru
      _
    // Predicated region
    $region6: #{tfidfnet_emb_forward.1} parent=1 // pred_check
      _
    $region7: #{tfidfnet_emb_forward.1} parent=1 // pred_check_branch
      %13 = sbr.rel (0) target = $region9
    $region8: #{tfidfnet_emb_forward.1} parent=1 // pred_region
      _
    $region9: #{tfidfnet_emb_forward.1} parent=1 // pred_fallthru
      _
    // Predicated region
    $region10: #{tfidfnet_emb_forward.1} parent=1 // pred_check
      _
    $region11: #{tfidfnet_emb_forward.1} parent=1 // pred_check_branch
      %15 = sbr.rel (0) target = $region13
    $region12: #{tfidfnet_emb_forward.1} parent=1 // pred_region
      _
    $region13: #{tfidfnet_emb_forward.1} parent=1 // pred_fallthru
      _
    // Predicated region
    $region14: #{tfidfnet_emb_forward.1} parent=1 // pred_check
      _
    $region15: #{tfidfnet_emb_forward.1} parent=1 // pred_check_branch
      %17 = sbr.rel (0) target = $region17
    $region16: #{tfidfnet_emb_forward.1} parent=1 // pred_region
      _
    $region17: #{tfidfnet_emb_forward.1} parent=1 // pred_fallthru
      _
    %p19 = scmp.eq.s32.totalorder 0, 0
    // Predicated region
    $region18: #{tfidfnet_emb_forward.1} parent=1 // pred_check
      %p20 = pneg %p19
    $region19: #{tfidfnet_emb_forward.1} parent=1 // pred_check_branch
      %22 = sbr.rel (%p20) target = $region21
    $region20: #{tfidfnet_emb_forward.1} parent=1 // pred_region
      %23 = vst [vmem:[#allocation2] sm:$0xff] 0.0
      %24 = vst [vmem:[#allocation2 + $0x8] sm:$0xff] 0.0
      %25 = vst [vmem:[#allocation2 + $0x10] sm:$0xff] 0.0
      %26 = vst [vmem:[#allocation2 + $0x18] sm:$0xff] 0.0
      %vm27 = vcmask 7168
      %28 = vst.msk [vmem:[#allocation3] sm:$0xff] %vm27, 0.0
      %29 = vst.msk [vmem:[#allocation3 + $0x8] sm:$0xff] %vm27, 0.0
      %30 = vst.msk [vmem:[#allocation3 + $0x10] sm:$0xff] %vm27, 0.0
      %31 = vst.msk [vmem:[#allocation3 + $0x18] sm:$0xff] %vm27, 0.0
    $region21: #{tfidfnet_emb_forward.1} parent=1 // pred_fallthru
      _
    %v32 = vld [vmem:[%s0] sm:$0xff]
    %v33 = vld [vmem:[%s0 + $0x8] sm:$0xff]
    %v34 = vld [vmem:[%s0 + $0x10] sm:$0xff]
    %v35 = vld [vmem:[%s0 + $0x18] sm:$0xff]
    %v36 = vld [vmem:[#allocation2] sm:$0xff]
    %v37 = vld [vmem:[#allocation2 + $0x8] sm:$0xff]
    %v38 = vld [vmem:[#allocation2 + $0x10] sm:$0xff]
    %v39 = vld [vmem:[#allocation2 + $0x18] sm:$0xff]
    %v40 = vld [vmem:[%s2] sm:$0xf]
    %v41 = vld [vmem:[%s2 + $0x4] sm:$0xf]
    %v42 = vld [vmem:[%s2 + $0x8] sm:$0xf]
    %v43 = vld [vmem:[%s2 + $0xc] sm:$0xf]
    %v44 = vld [vmem:[%s2 + $0x10] sm:$0xf]
    %v45 = vld [vmem:[%s2 + $0x14] sm:$0xf]
    %v46 = vld [vmem:[%s2 + $0x18] sm:$0xf]
    %v47 = vld [vmem:[%s2 + $0x1c] sm:$0xf]
    %v48 = vld [vmem:[%s2 + $0x20] sm:$0xf]
    %v49 = vld [vmem:[%s2 + $0x24] sm:$0xf]
    %v50 = vld [vmem:[%s2 + $0x28] sm:$0xf]
    %v51 = vld [vmem:[%s2 + $0x2c] sm:$0xf]
    %v52 = vld [vmem:[%s2 + $0x30] sm:$0xf]
    %v53 = vld [vmem:[%s2 + $0x34] sm:$0xf]
    %v54 = vld [vmem:[%s2 + $0x38] sm:$0xf]
    %v55 = vld [vmem:[%s2 + $0x3c] sm:$0xf]
    %v56 = vld [vmem:[%s2 + $0x40] sm:$0xf]
    %v57 = vld [vmem:[%s2 + $0x44] sm:$0xf]
    %v58 = vld [vmem:[%s2 + $0x48] sm:$0xf]
    %v59 = vld [vmem:[%s2 + $0x4c] sm:$0xf]
    %v60 = vld [vmem:[%s2 + $0x50] sm:$0xf]
    %v61 = vld [vmem:[%s2 + $0x54] sm:$0xf]
    %v62 = vld [vmem:[%s2 + $0x58] sm:$0xf]
    %v63 = vld [vmem:[%s2 + $0x5c] sm:$0xf]
    %v64 = vld [vmem:[%s2 + $0x60] sm:$0xf]
    %v65 = vld [vmem:[%s2 + $0x64] sm:$0xf]
    %v66 = vld [vmem:[%s2 + $0x68] sm:$0xf]
    %v67 = vld [vmem:[%s2 + $0x6c] sm:$0xf]
    %v68 = vld [vmem:[%s2 + $0x70] sm:$0xf]
    %v69 = vld [vmem:[%s2 + $0x74] sm:$0xf]
    %v70 = vld [vmem:[%s2 + $0x78] sm:$0xf]
    %v71 = vld [vmem:[%s2 + $0x7c] sm:$0xf]
    %v76 = vunpack.c.l.b16 %v32
    %v77 = vunpack.c.h.b16 %v32
    %v78 = vunpack.c.l.b16 %v33
    %v79 = vunpack.c.h.b16 %v33
    %v80 = vunpack.c.l.b16 %v34
    %v81 = vunpack.c.h.b16 %v34
    %v82 = vunpack.c.l.b16 %v35
    %v83 = vunpack.c.h.b16 %v35
    %v84 = vpack.c.b16 %v78, %v76
    %v85 = vpack.c.b16 %v79, %v77
    %v86 = vpack.c.b16 %v82, %v80
    %v87 = vpack.c.b16 %v83, %v81
    %v124 = vunpack.c.l.b16 %v40
    %v125 = vunpack.c.l.b16 %v41
    %v126 = vunpack.c.l.b16 %v42
    %v127 = vunpack.c.l.b16 %v43
    %v128 = vunpack.c.l.b16 %v44
    %v129 = vunpack.c.l.b16 %v45
    %v130 = vunpack.c.l.b16 %v46
    %v131 = vunpack.c.l.b16 %v47
    %v132 = vunpack.c.l.b16 %v48
    %v133 = vunpack.c.l.b16 %v49
    %v134 = vunpack.c.l.b16 %v50
    %v135 = vunpack.c.l.b16 %v51
    %v136 = vunpack.c.l.b16 %v52
    %v137 = vunpack.c.l.b16 %v53
    %v138 = vunpack.c.l.b16 %v54
    %v139 = vunpack.c.l.b16 %v55
    %v140 = vunpack.c.l.b16 %v56
    %v141 = vunpack.c.l.b16 %v57
    %v142 = vunpack.c.l.b16 %v58
    %v143 = vunpack.c.l.b16 %v59
    %v144 = vunpack.c.l.b16 %v60
    %v145 = vunpack.c.l.b16 %v61
    %v146 = vunpack.c.l.b16 %v62
    %v147 = vunpack.c.l.b16 %v63
    %v148 = vunpack.c.l.b16 %v64
    %v149 = vunpack.c.l.b16 %v65
    %v150 = vunpack.c.l.b16 %v66
    %v151 = vunpack.c.l.b16 %v67
    %v152 = vunpack.c.l.b16 %v68
    %v153 = vunpack.c.l.b16 %v69
    %v154 = vunpack.c.l.b16 %v70
    %v155 = vunpack.c.l.b16 %v71
    %v156 = vpack.c.b16 %v125, %v124
    %v157 = vpack.c.b16 %v127, %v126
    %v158 = vpack.c.b16 %v129, %v128
    %v159 = vpack.c.b16 %v131, %v130
    %v160 = vpack.c.b16 %v133, %v132
    %v161 = vpack.c.b16 %v135, %v134
    %v162 = vpack.c.b16 %v137, %v136
    %v163 = vpack.c.b16 %v139, %v138
    %v164 = vpack.c.b16 %v141, %v140
    %v165 = vpack.c.b16 %v143, %v142
    %v166 = vpack.c.b16 %v145, %v144
    %v167 = vpack.c.b16 %v147, %v146
    %v168 = vpack.c.b16 %v149, %v148
    %v169 = vpack.c.b16 %v151, %v150
    %v170 = vpack.c.b16 %v153, %v152
    %v171 = vpack.c.b16 %v155, %v154
    %188 = vmatprep.subr.bf16.mxu0 0
    %189 = vmatpush1.bf16.msra.mxu0 %v156
    %190 = vmatprep.subr.bf16.mxu0 0
    %191 = vmatpush1.bf16.msra.mxu0 %v157
    %192 = vmatprep.subr.bf16.mxu0 0
    %193 = vmatpush1.bf16.msra.mxu0 %v158
    %194 = vmatprep.subr.bf16.mxu0 0
    %195 = vmatpush1.bf16.msra.mxu0 %v159
    %196 = vmatprep.subr.bf16.mxu0 0
    %197 = vmatpush1.bf16.msra.mxu0 %v160
    %198 = vmatprep.subr.bf16.mxu0 0
    %199 = vmatpush1.bf16.msra.mxu0 %v161
    %200 = vmatprep.subr.bf16.mxu0 0
    %201 = vmatpush1.bf16.msra.mxu0 %v162
    %202 = vmatprep.subr.bf16.mxu0 0
    %203 = vmatpush1.bf16.msra.mxu0 %v163
    %204 = vmatprep.subr.bf16.mxu0 0
    %205 = vmatpush1.bf16.msra.mxu0 %v164
    %206 = vmatprep.subr.bf16.mxu0 0
    %207 = vmatpush1.bf16.msra.mxu0 %v165
    %208 = vmatprep.subr.bf16.mxu0 0
    %209 = vmatpush1.bf16.msra.mxu0 %v166
    %210 = vmatprep.subr.bf16.mxu0 0
    %211 = vmatpush1.bf16.msra.mxu0 %v167
    %212 = vmatprep.subr.bf16.mxu0 0
    %213 = vmatpush1.bf16.msra.mxu0 %v168
    %214 = vmatprep.subr.bf16.mxu0 0
    %215 = vmatpush1.bf16.msra.mxu0 %v169
    %216 = vmatprep.subr.bf16.mxu0 0
    %217 = vmatpush1.bf16.msra.mxu0 %v170
    %218 = vmatprep.subr.bf16.mxu0 0
    %219 = vmatpush1.bf16.msra.mxu0 %v171
    %220 = vmatprep.mubr.bf16.mxu0 %v85
    %221 = vmatmul.mubr.bf16.gmra.mrb[0].mxu0 %v84
    %v222 = vpop.f32.mrb[0].mxu0
    %v223 = vadd.f32 0.0, %v222
    %v224 = vpop.f32.mrb[0].mxu0
    %v225 = vpop.f32.mrb[0].mxu0
    %v226 = vadd.f32 0.0, %v225
    %v227 = vpop.f32.mrb[0].mxu0
    %228 = vmatprep.mubr.bf16.mxu0 %v87
    %229 = vmatmul.mubr.bf16.gmra.mrb[0].mxu0 %v86
    %v230 = vpop.f32.mrb[0].mxu0
    %v231 = vadd.f32 0.0, %v230
    %v232 = vpop.f32.mrb[0].mxu0
    %v233 = vpop.f32.mrb[0].mxu0
    %v234 = vadd.f32 0.0, %v233
    %v235 = vpop.f32.mrb[0].mxu0
    %236 = vdwg.mxu0
    %v237 = vadd.f32 %v36, %v223
    %v238 = vadd.f32 %v37, %v226
    %v239 = vadd.f32 %v38, %v231
    %v240 = vadd.f32 %v39, %v234
    %241 = vst [vmem:[#allocation2] sm:$0xff] %v237
    %242 = vst [vmem:[#allocation2 + $0x8] sm:$0xff] %v238
    %243 = vst [vmem:[#allocation2 + $0x10] sm:$0xff] %v239
    %244 = vst [vmem:[#allocation2 + $0x18] sm:$0xff] %v240
    %v245 = vunpack.c.l.bf16 %v32
    %v246 = vunpack.c.h.bf16 %v32
    %v247 = vunpack.c.l.bf16 %v33
    %v248 = vunpack.c.h.bf16 %v33
    %v249 = vunpack.c.l.bf16 %v34
    %v250 = vunpack.c.h.bf16 %v34
    %v251 = vunpack.c.l.bf16 %v35
    %v252 = vunpack.c.h.bf16 %v35
    %v253 = vld [vmem:[%s1] sm:$0x3]
    %v255 = vlaneseq
    %v256 = vshrl.u32 %v255, 7
    %v257 = vsub.s32 0, %v256
    %v258 = vrot.slane %v253, %v257
    %v259 = vlaneseq
    %v260 = vshrl.u32 %v259, 7
    %v261 = vsub.s32 1, %v260
    %v262 = vrot.slane %v253, %v261
    %v265 = vmul.f32 %v245, %v258
    %v266 = vmul.f32 %v246, %v262
    %v267 = vmul.f32 %v247, %v258
    %v268 = vmul.f32 %v248, %v262
    %v269 = vmul.f32 %v249, %v258
    %v270 = vmul.f32 %v250, %v262
    %v271 = vmul.f32 %v251, %v258
    %v272 = vmul.f32 %v252, %v262
    %v273 = vld [vmem:[#allocation3] sm:$0xff]
    %v274 = vld [vmem:[#allocation3 + $0x8] sm:$0xff]
    %v275 = vld [vmem:[#allocation3 + $0x10] sm:$0xff]
    %v276 = vld [vmem:[#allocation3 + $0x18] sm:$0xff]
    %v277 = vmul.f32 %v265, %v265
    %v278 = vmul.f32 %v266, %v266
    %v279 = vmul.f32 %v267, %v267
    %v280 = vmul.f32 %v268, %v268
    %v281 = vmul.f32 %v269, %v269
    %v282 = vmul.f32 %v270, %v270
    %v283 = vmul.f32 %v271, %v271
    %v284 = vmul.f32 %v272, %v272
    %v285 = vadd.f32 %v277, %v278
    %286 = vadd.xlane.f32.xlu0 %v285
    %v287 = vpop.xlane.xlu0 %286
    %v288 = vadd.f32 %v279, %v280
    %289 = vadd.xlane.f32.xlu0 %v288
    %v290 = vpop.xlane.xlu0 %289
    %v291 = vadd.f32 %v281, %v282
    %292 = vadd.xlane.f32.xlu0 %v291
    %v293 = vpop.xlane.xlu0 %292
    %v294 = vadd.f32 %v283, %v284
    %295 = vadd.xlane.f32.xlu0 %v294
    %v296 = vpop.xlane.xlu0 %295
    %v297 = vadd.f32 %v273, %v287
    %v298 = vadd.f32 %v274, %v290
    %v299 = vadd.f32 %v275, %v293
    %v300 = vadd.f32 %v276, %v296
    %vm301 = vcmask 7168
    %302 = vst.msk [vmem:[#allocation3] sm:$0xff] %vm301, %v297
    %303 = vst.msk [vmem:[#allocation3 + $0x8] sm:$0xff] %vm301, %v298
    %304 = vst.msk [vmem:[#allocation3 + $0x10] sm:$0xff] %vm301, %v299
    %305 = vst.msk [vmem:[#allocation3 + $0x18] sm:$0xff] %vm301, %v300
    // Predicated region
    $region22: #{tfidfnet_emb_forward.1} parent=1 // pred_check
      %p306 = pneg %p19
    $region23: #{tfidfnet_emb_forward.1} parent=1 // pred_check_branch
      %308 = sbr.rel (%p306) target = $region25
    $region24: #{tfidfnet_emb_forward.1} parent=1 // pred_region
      %v309 = vld [vmem:[#allocation3] sm:$0xff]
      %v310 = vld [vmem:[#allocation3 + $0x8] sm:$0xff]
      %v311 = vld [vmem:[#allocation3 + $0x10] sm:$0xff]
      %v312 = vld [vmem:[#allocation3 + $0x18] sm:$0xff]
      %v313 = vmax.f32 %v309, 1e-24
      %v314 = vmax.f32 %v310, 1e-24
      %v315 = vmax.f32 %v311, 1e-24
      %v316 = vmax.f32 %v312, 1e-24
      %v317 = vrsqrt.pop %v313
      %v318 = vrsqrt.pop %v314
      %v319 = vrsqrt.pop %v315
      %v320 = vrsqrt.pop %v316
      %v321 = vld [vmem:[#allocation2] sm:$0xff]
      %v322 = vld [vmem:[#allocation2 + $0x8] sm:$0xff]
      %v323 = vld [vmem:[#allocation2 + $0x10] sm:$0xff]
      %v324 = vld [vmem:[#allocation2 + $0x18] sm:$0xff]
      %326 = vset.pattern.permute.xlu0 0
      %327 = vperm.xlu0 %326, %v317
      %v328 = vpop.permute.xlu0 %327
      %331 = vset.pattern.permute.xlu0 0
      %332 = vperm.xlu0 %331, %v318
      %v333 = vpop.permute.xlu0 %332
      %336 = vset.pattern.permute.xlu0 0
      %337 = vperm.xlu0 %336, %v319
      %v338 = vpop.permute.xlu0 %337
      %341 = vset.pattern.permute.xlu0 0
      %342 = vperm.xlu0 %341, %v320
      %v343 = vpop.permute.xlu0 %342
      %v345 = vmul.f32 %v321, %v328
      %v346 = vmul.f32 %v322, %v333
      %v347 = vmul.f32 %v323, %v338
      %v348 = vmul.f32 %v324, %v343
      %v349 = vld [vmem:[%s3] sm:$0x1]
      %v351 = vlaneseq
      %v352 = vshrl.u32 %v351, 7
      %v353 = vsub.s32 0, %v352
      %v354 = vrot.slane %v349, %v353
      %v356 = vadd.f32 %v345, %v354
      %v357 = vadd.f32 %v346, %v354
      %v358 = vadd.f32 %v347, %v354
      %v359 = vadd.f32 %v348, %v354
      %v360 = vtanh.pop %v356
      %v361 = vtanh.pop %v357
      %v362 = vtanh.pop %v358
      %v363 = vtanh.pop %v359
      %364 = vst [vmem:[#allocation4] sm:$0xff] %v360
      %365 = vst [vmem:[#allocation4 + $0x8] sm:$0xff] %v361
      %366 = vst [vmem:[#allocation4 + $0x10] sm:$0xff] %v362
      %367 = vst [vmem:[#allocation4 + $0x18] sm:$0xff] %v363
    $region25: #{tfidfnet_emb_forward.1} parent=1 // pred_fallthru
      _
    // Predicated region
    $region26: #{tfidfnet_emb_forward.1} parent=1 // pred_check
      _
    $region27: #{tfidfnet_emb_forward.1} parent=1 // pred_check_branch
      %369 = sbr.rel (0) target = $region29
    $region28: #{tfidfnet_emb_forward.1} parent=1 // pred_region
      %s371 = ssub.s32 512, 384
      %372 = vsyncadd [#allocation5], %s371
      %s373 = sshll.u32 [#allocation4], 4
      %s374 = int_to_ptr.vmem [resolvable:$true] %s373
      %379 = dma.vmem_to_hbm [thread:$0]  %s374, 384, %s4, [#allocation5], 128, 128, 8
    $region29: #{tfidfnet_emb_forward.1} parent=1 // pred_fallthru
      _
    // Predicated region
    $region30: #{tfidfnet_emb_forward.1} parent=1 // pred_check
      _
    $region31: #{tfidfnet_emb_forward.1} parent=1 // pred_check_branch
      %381 = sbr.rel (0) target = $region33
    $region32: #{tfidfnet_emb_forward.1} parent=1 // pred_region
      %382 = dma.done [#allocation5], 512
    $region33: #{tfidfnet_emb_forward.1} parent=1 // pred_fallthru
      _
    %383 = vsyncpa [#allocation5], 1

</llo_original>
